<compile_context>
chip_gen: v6e
topology: v6e:2x2x1
jax: 0.10.0
libtpu: 0.0.40
codegen_flags: <defaults>
</compile_context>

<pallas_src>
import jax
import jax.numpy as jnp
from jax.experimental import pallas as pl
from jax.experimental.pallas import tpu as pltpu


def _make_res_kernel(x_ref, su_ref, sd_ref, w1_ref, b1_ref, w2_ref, b2_ref,
                     out_ref):
    # x_ref:   (M, L)    activations, M = N*H, L = W*C (lane-dense)
    # su_ref:  (M, M)    row-shift "up"   operator (row r <- row r-1, 0 at image top)
    # sd_ref:  (M, M)    row-shift "down" operator (row r <- row r+1, 0 at image bottom)
    # w*_ref:  (3L, L)   banded conv weights, row blocks ordered [kh=0, kh=1, kh=2]
    # b*_ref:  (1, L)    bias tiled across W
    # out_ref: (M, L)
    x = x_ref[...].astype(jnp.float32)
    su = su_ref[...]
    sd = sd_ref[...]

    def conv3x3(a, w_ref, b_ref):
        # rows shifted by +/-1 inside each image (zero-filled at H borders)
        a_up = jnp.dot(su, a, preferred_element_type=jnp.float32)   # row h-1
        a_dn = jnp.dot(sd, a, preferred_element_type=jnp.float32)   # row h+1
        # fuse the 3 row taps into one K = 3*L contraction on the MXU
        acat = jnp.concatenate([a_up, a, a_dn], axis=1)             # (M, 3L)
        y = jnp.dot(acat, w_ref[...], preferred_element_type=jnp.float32)
        return y + b_ref[...]                                       # (M, L)

    act = jnp.maximum(conv3x3(x, w1_ref, b1_ref), 0.0)
    out = conv3x3(act, w2_ref, b2_ref) + x                          # residual
    out_ref[...] = out.astype(out_ref.dtype)


def _band_weights(w_hwio, W):
    """Build the banded (3*W*Cin, W*Cout) matrix for a 3x3 'same' conv.

    B[kh][w_in*Cin + ci, w_out*Cout + co] = w[kh, w_in - w_out + 1, ci, co]
    when |w_in - w_out| <= 1, else 0 (zero band edges == zero W-padding).
    Row blocks are stacked kh-major: [kh=0 ; kh=1 ; kh=2].
    """
    kh, kw, Cin, Cout = w_hwio.shape
    w_in = jnp.arange(W)[:, None]          # (W, 1)
    w_out = jnp.arange(W)[None, :]         # (1, W)
    dw = w_in - w_out + 1                  # (W, W)
    valid = (dw >= 0) & (dw < kw)
    dw_c = jnp.clip(dw, 0, kw - 1)
    wb = w_hwio[:, dw_c, :, :]             # (kh, W_in, W_out, Cin, Cout)
    wb = jnp.where(valid[None, :, :, None, None], wb, 0.0)
    wb = jnp.transpose(wb, (0, 1, 3, 2, 4))        # (kh, W_in, Cin, W_out, Cout)
    return wb.reshape(kh * W * Cin, W * Cout)      # (3*W*Cin, W*Cout)


def _shift_matrices(N, H):
    """Constant (M, M) row-shift operators, zero-filled at image boundaries."""
    M = N * H
    r = jnp.arange(M)
    su = ((r[:, None] - 1 == r[None, :]) & (r[:, None] % H != 0)
          ).astype(jnp.float32)            # (su @ a)[r] = a[r-1] or 0 at image top
    sd = ((r[:, None] + 1 == r[None, :]) & (r[:, None] % H != H - 1)
          ).astype(jnp.float32)            # (sd @ a)[r] = a[r+1] or 0 at image bottom
    return su, sd


def make_res_forward(x_nchw, w1, b1, w2, b2):
    """Pallas forward.  x_nchw: (N, C, H, W); w1/w2 HWIO (3,3,C,C); b1/b2 (C,)."""
    x = jnp.transpose(x_nchw, (0, 2, 3, 1))        # NCHW -> NHWC
    N, H, W, C = x.shape
    M, L = N * H, W * C

    x2d = x.reshape(M, L)                          # lane-dense (W*C in lanes)
    w1b = _band_weights(w1, W)                     # (3L, L)
    w2b = _band_weights(w2, W)                     # (3L, L)
    b1t = jnp.tile(b1, W).reshape(1, L)
    b2t = jnp.tile(b2, W).reshape(1, L)
    su, sd = _shift_matrices(N, H)                 # (M, M) each

    out2d = pl.pallas_call(
        _make_res_kernel,
        out_shape=jax.ShapeDtypeStruct((M, L), x.dtype),
        grid_spec=pltpu.PrefetchScalarGridSpec(
            num_scalar_prefetch=0,
            grid=(1,),                             # single step: whole batch in one block
            in_specs=[
                pl.BlockSpec((M, L), lambda i: (0, 0)),       # x
                pl.BlockSpec((M, M), lambda i: (0, 0)),       # S_up
                pl.BlockSpec((M, M), lambda i: (0, 0)),       # S_dn
                pl.BlockSpec((3 * L, L), lambda i: (0, 0)),   # banded w1
                pl.BlockSpec((1, L), lambda i: (0, 0)),       # b1 (tiled)
                pl.BlockSpec((3 * L, L), lambda i: (0, 0)),   # banded w2
                pl.BlockSpec((1, L), lambda i: (0, 0)),       # b2 (tiled)
            ],
            out_specs=pl.BlockSpec((M, L), lambda i: (0, 0)),
        ),
        compiler_params=pltpu.CompilerParams(
            dimension_semantics=("arbitrary",)),
    )(x2d, su, sd, w1b, b1t, w2b, b2t)

    out = out2d.reshape(N, H, W, C)
    return jnp.transpose(out, (0, 3, 1, 2))        # NHWC -> NCHW
    # TODO(synk): for large H/W/C, tile M (rows) across the grid with a 1-row
    # halo and mark it "parallel" (megacore / v7x 64 MiB VMEM); unnecessary at
    # these shapes.


def _reference_forward(x_nchw, w1, b1, w2, b2):
    """Pure-JAX reference (lax conv) for correctness checking."""
    x = jnp.transpose(x_nchw, (0, 2, 3, 1))
    dn = ('NHWC', 'HWIO', 'NHWC')
    y = jax.lax.conv_general_dilated(x, w1, (1, 1), 'SAME',
                                     dimension_numbers=dn) + b1
    y = jnp.maximum(y, 0.0)
    y = jax.lax.conv_general_dilated(y, w2, (1, 1), 'SAME',
                                     dimension_numbers=dn) + b2
    y = y + x
    return jnp.transpose(y, (0, 3, 1, 2))


if __name__ == "__main__":
    # Small shapes consistent with the module: N=2, nFeat=8, H=W=16 (W*C = 128).
    N, C, H, W = 2, 8, 16, 16

    key = jax.random.PRNGKey(0)
    kx, k1, kb1, k2, kb2 = jax.random.split(key, 5)

    # Deterministic "PyTorch-like" init: uniform(-bound, bound), bound=1/sqrt(fan_in)
    fan_in = C * 3 * 3
    bound = 1.0 / (fan_in ** 0.5)
    x = jax.random.normal(kx, (N, C, H, W), jnp.float32)
    w1 = jax.random.uniform(k1, (3, 3, C, C), jnp.float32, -bound, bound)   # HWIO
    b1 = jax.random.uniform(kb1, (C,), jnp.float32, -bound, bound)
    w2 = jax.random.uniform(k2, (3, 3, C, C), jnp.float32, -bound, bound)   # HWIO
    b2 = jax.random.uniform(kb2, (C,), jnp.float32, -bound, bound)

    out = make_res_forward(x, w1, b1, w2, b2)
    out = jax.block_until_ready(out)

    ref = jax.block_until_ready(_reference_forward(x, w1, b1, w2, b2))
    assert out.shape == (N, C, H, W)
    assert jnp.allclose(out, ref, atol=1e-4, rtol=1e-4), "mismatch vs reference"

    print("KERNEL_OK")
</pallas_src>

<mosaic_0001>
module attributes {stable_mosaic.version = 11 : i64} {
  func.func @_make_res_kernel(%arg0: i32, %arg1: memref<32x128xf32, #tpu.memory_space<vmem>>, %arg2: memref<32x32xf32, #tpu.memory_space<vmem>>, %arg3: memref<32x32xf32, #tpu.memory_space<vmem>>, %arg4: memref<384x128xf32, #tpu.memory_space<vmem>>, %arg5: memref<1x128xf32, #tpu.memory_space<vmem>>, %arg6: memref<384x128xf32, #tpu.memory_space<vmem>>, %arg7: memref<1x128xf32, #tpu.memory_space<vmem>>, %arg8: memref<32x128xf32, #tpu.memory_space<vmem>>) attributes {dimension_semantics = [#tpu.dimension_semantics<arbitrary>], iteration_bounds = array<i64: 1>, scalar_prefetch = 0 : i64, scratch_operands = 0 : i64, tpu.core_type = #tpu.core_type<tc>, window_params = [{pipeline_mode = #tpu.pipeline_mode<synchronous>, transform_indices = @transform_0, window_bounds = array<i64: 32, 128>}, {pipeline_mode = #tpu.pipeline_mode<synchronous>, transform_indices = @transform_1, window_bounds = array<i64: 32, 32>}, {pipeline_mode = #tpu.pipeline_mode<synchronous>, transform_indices = @transform_2, window_bounds = array<i64: 32, 32>}, {pipeline_mode = #tpu.pipeline_mode<synchronous>, transform_indices = @transform_3, window_bounds = array<i64: 384, 128>}, {pipeline_mode = #tpu.pipeline_mode<synchronous>, transform_indices = @transform_4, window_bounds = array<i64: 1, 128>}, {pipeline_mode = #tpu.pipeline_mode<synchronous>, transform_indices = @transform_5, window_bounds = array<i64: 384, 128>}, {pipeline_mode = #tpu.pipeline_mode<synchronous>, transform_indices = @transform_6, window_bounds = array<i64: 1, 128>}, {pipeline_mode = #tpu.pipeline_mode<synchronous>, transform_indices = @transform_7, window_bounds = array<i64: 32, 128>}]} {
    %c0 = arith.constant 0 : index
    %c0_0 = arith.constant 0 : index
    %0 = vector.load %arg1[%c0, %c0_0] : memref<32x128xf32, #tpu.memory_space<vmem>>, vector<32x128xf32>
    %c0_1 = arith.constant 0 : index
    %c0_2 = arith.constant 0 : index
    %1 = vector.load %arg2[%c0_1, %c0_2] : memref<32x32xf32, #tpu.memory_space<vmem>>, vector<32x32xf32>
    %c0_3 = arith.constant 0 : index
    %c0_4 = arith.constant 0 : index
    %2 = vector.load %arg3[%c0_3, %c0_4] : memref<32x32xf32, #tpu.memory_space<vmem>>, vector<32x32xf32>
    %cst = arith.constant dense<0.000000e+00> : vector<32x128xf32>
    %3 = tpu.matmul %1, %0, %cst {dimension_numbers = #tpu.dot_dimension_numbers<[1], [0], [0], [1], [0, 0, 1, 1], [], []>} : vector<32x32xf32>, vector<32x128xf32>, vector<32x128xf32> -> vector<32x128xf32>
    %cst_5 = arith.constant dense<0.000000e+00> : vector<32x128xf32>
    %4 = tpu.matmul %2, %0, %cst_5 {dimension_numbers = #tpu.dot_dimension_numbers<[1], [0], [0], [1], [0, 0, 1, 1], [], []>} : vector<32x32xf32>, vector<32x128xf32>, vector<32x128xf32> -> vector<32x128xf32>
    %5 = tpu.concatenate %3, %0, %4 in 1 : vector<32x128xf32>, vector<32x128xf32>, vector<32x128xf32> -> vector<32x384xf32>
    %c0_6 = arith.constant 0 : index
    %c0_7 = arith.constant 0 : index
    %6 = vector.load %arg4[%c0_6, %c0_7] : memref<384x128xf32, #tpu.memory_space<vmem>>, vector<384x128xf32>
    %cst_8 = arith.constant dense<0.000000e+00> : vector<32x128xf32>
    %7 = tpu.matmul %5, %6, %cst_8 {dimension_numbers = #tpu.dot_dimension_numbers<[1], [0], [0], [1], [0, 0, 1, 1], [], []>} : vector<32x384xf32>, vector<384x128xf32>, vector<32x128xf32> -> vector<32x128xf32>
    %c0_9 = arith.constant 0 : index
    %c0_10 = arith.constant 0 : index
    %8 = vector.load %arg5[%c0_9, %c0_10] : memref<1x128xf32, #tpu.memory_space<vmem>>, vector<1x128xf32>
    %9 = vector.broadcast %8 : vector<1x128xf32> to vector<32x128xf32>
    %10 = arith.addf %7, %9 : vector<32x128xf32>
    %cst_11 = arith.constant 0.000000e+00 : f32
    %11 = vector.broadcast %cst_11 : f32 to vector<32x128xf32>
    %12 = arith.maximumf %10, %11 : vector<32x128xf32>
    %cst_12 = arith.constant dense<0.000000e+00> : vector<32x128xf32>
    %13 = tpu.matmul %1, %12, %cst_12 {dimension_numbers = #tpu.dot_dimension_numbers<[1], [0], [0], [1], [0, 0, 1, 1], [], []>} : vector<32x32xf32>, vector<32x128xf32>, vector<32x128xf32> -> vector<32x128xf32>
    %cst_13 = arith.constant dense<0.000000e+00> : vector<32x128xf32>
    %14 = tpu.matmul %2, %12, %cst_13 {dimension_numbers = #tpu.dot_dimension_numbers<[1], [0], [0], [1], [0, 0, 1, 1], [], []>} : vector<32x32xf32>, vector<32x128xf32>, vector<32x128xf32> -> vector<32x128xf32>
    %15 = tpu.concatenate %13, %12, %14 in 1 : vector<32x128xf32>, vector<32x128xf32>, vector<32x128xf32> -> vector<32x384xf32>
    %c0_14 = arith.constant 0 : index
    %c0_15 = arith.constant 0 : index
    %16 = vector.load %arg6[%c0_14, %c0_15] : memref<384x128xf32, #tpu.memory_space<vmem>>, vector<384x128xf32>
    %cst_16 = arith.constant dense<0.000000e+00> : vector<32x128xf32>
    %17 = tpu.matmul %15, %16, %cst_16 {dimension_numbers = #tpu.dot_dimension_numbers<[1], [0], [0], [1], [0, 0, 1, 1], [], []>} : vector<32x384xf32>, vector<384x128xf32>, vector<32x128xf32> -> vector<32x128xf32>
    %c0_17 = arith.constant 0 : index
    %c0_18 = arith.constant 0 : index
    %18 = vector.load %arg7[%c0_17, %c0_18] : memref<1x128xf32, #tpu.memory_space<vmem>>, vector<1x128xf32>
    %19 = vector.broadcast %18 : vector<1x128xf32> to vector<32x128xf32>
    %20 = arith.addf %17, %19 : vector<32x128xf32>
    %21 = arith.addf %20, %0 : vector<32x128xf32>
    %c0_19 = arith.constant 0 : index
    %c0_20 = arith.constant 0 : index
    %22 = vector.load %arg8[%c0_19, %c0_20] : memref<32x128xf32, #tpu.memory_space<vmem>>, vector<32x128xf32>
    tpu.vector_store %arg8[%c0_19, %c0_20], %21 {strides = array<i32>} : memref<32x128xf32, #tpu.memory_space<vmem>>, vector<32x128xf32>,
    return
  }
  func.func @transform_0(%arg0: i32) -> (i32, i32) {
    %c0_i32 = arith.constant 0 : i32
    %c0_i32_0 = arith.constant 0 : i32
    %c0_i32_1 = arith.constant 0 : i32
    return %c0_i32, %c0_i32_0 : i32, i32
  }
  func.func @transform_1(%arg0: i32) -> (i32, i32) {
    %c0_i32 = arith.constant 0 : i32
    %c0_i32_0 = arith.constant 0 : i32
    %c0_i32_1 = arith.constant 0 : i32
    return %c0_i32, %c0_i32_0 : i32, i32
  }
  func.func @transform_2(%arg0: i32) -> (i32, i32) {
    %c0_i32 = arith.constant 0 : i32
    %c0_i32_0 = arith.constant 0 : i32
    %c0_i32_1 = arith.constant 0 : i32
    return %c0_i32, %c0_i32_0 : i32, i32
  }
  func.func @transform_3(%arg0: i32) -> (i32, i32) {
    %c0_i32 = arith.constant 0 : i32
    %c0_i32_0 = arith.constant 0 : i32
    %c0_i32_1 = arith.constant 0 : i32
    return %c0_i32, %c0_i32_0 : i32, i32
  }
  func.func @transform_4(%arg0: i32) -> (i32, i32) {
    %c0_i32 = arith.constant 0 : i32
    %c0_i32_0 = arith.constant 0 : i32
    %c0_i32_1 = arith.constant 0 : i32
    return %c0_i32, %c0_i32_0 : i32, i32
  }
  func.func @transform_5(%arg0: i32) -> (i32, i32) {
    %c0_i32 = arith.constant 0 : i32
    %c0_i32_0 = arith.constant 0 : i32
    %c0_i32_1 = arith.constant 0 : i32
    return %c0_i32, %c0_i32_0 : i32, i32
  }
  func.func @transform_6(%arg0: i32) -> (i32, i32) {
    %c0_i32 = arith.constant 0 : i32
    %c0_i32_0 = arith.constant 0 : i32
    %c0_i32_1 = arith.constant 0 : i32
    return %c0_i32, %c0_i32_0 : i32, i32
  }
  func.func @transform_7(%arg0: i32) -> (i32, i32) {
    %c0_i32 = arith.constant 0 : i32
    %c0_i32_0 = arith.constant 0 : i32
    %c0_i32_1 = arith.constant 0 : i32
    return %c0_i32, %c0_i32_0 : i32, i32
  }
}

</mosaic_0001>

<llo_original>
// kernel: tpu_custom_call.1
$region0: #{tpu_custom_call.1}
  #allocation0 [shape = 'u32[]', space=smem, size = 0x4, offset = 0x4, fixed_abs, tag = 'smem constant byte address 0x4 - core index']
  #allocation1 [shape = 'u32[144,128]{1,0:T(1,128)}', space=vmem, size = 0x12000, scoped, tag = 'internal scratch']
  %s0 = inlined_call_operand.hbm [shape: f32[32,128], index: 0, kind: input, shape index: {}]
  %s1 = inlined_call_operand.hbm [shape: f32[32,32], index: 1, kind: input, shape index: {}]
  %s2 = inlined_call_operand.hbm [shape: f32[32,32], index: 2, kind: input, shape index: {}]
  %s3 = inlined_call_operand.hbm [shape: f32[384,128], index: 3, kind: input, shape index: {}]
  %s4 = inlined_call_operand.vmem [shape: f32[1,128], index: 4, kind: input, shape index: {}]
  %s5 = inlined_call_operand.hbm [shape: f32[384,128], index: 5, kind: input, shape index: {}]
  %s6 = inlined_call_operand.vmem [shape: f32[1,128], index: 6, kind: input, shape index: {}]
  %s7 = inlined_call_operand.hbm [shape: f32[32,128], index: 7, kind: output, shape index: {}]
  %s8 = sld [smem:[#allocation0]]
  $region58: #{tpu_custom_call.1} parent=0
    _
  %s10 = ssub.s32 1, %s8
  %s11 = scalar_select 0, %s10, %s8
  $region1: #{tpu_custom_call.1} parent=0
    #allocation2 [shape = 'u8[16384]{0}', space=vmem, size = 0x4000, scoped, tag = 'input window, operand 0, single buffered']
    #allocation3 [shape = 's32[1]{0}', space=sflag, size = 0x4, scoped, tag = 'scoped memory for tpu_custom_call.1']
    #allocation4 [shape = 's32[1]{0}', space=sflag, size = 0x4, scoped, tag = 'scoped memory for tpu_custom_call.1']
    #allocation5 [shape = 'u8[16384]{0}', space=vmem, size = 0x4000, scoped, tag = 'input window, operand 1, single buffered']
    #allocation6 [shape = 's32[1]{0}', space=sflag, size = 0x4, scoped, tag = 'scoped memory for tpu_custom_call.1']
    #allocation7 [shape = 'u8[16384]{0}', space=vmem, size = 0x4000, scoped, tag = 'input window, operand 2, single buffered']
    #allocation8 [shape = 'u8[196608]{0}', space=vmem, size = 0x30000, scoped, tag = 'input window, operand 3, single buffered']
    #allocation9 [shape = 's32[1]{0}', space=sflag, size = 0x4, scoped, tag = 'scoped memory for tpu_custom_call.1']
    #allocation10 [shape = 'u8[196608]{0}', space=vmem, size = 0x30000, scoped, tag = 'input window, operand 5, single buffered']
    #allocation11 [shape = 'u8[16384]{0}', space=vmem, size = 0x4000, scoped, tag = 'output window, operand 0, single buffered']
    %12 = vsyncpa [#allocation3], 0
    %13 = vsyncpa [#allocation6], 0
    %14 = vsyncpa [#allocation9], 0
    %15 = vsyncpa [#allocation4], 0
    // Predicated region
    $region2: #{tpu_custom_call.1} parent=1 // pred_check
      _
    $region3: #{tpu_custom_call.1} parent=1 // pred_check_branch
      %17 = sbr.rel (0) target = $region5
    $region4: #{tpu_custom_call.1} parent=1 // pred_region
      %s19 = ssub.s32 512, 512
      %20 = vsyncadd [#allocation3], %s19
      %s21 = sshll.u32 [#allocation2], 4
      %s22 = int_to_ptr.vmem [resolvable:$true] %s21
      %27 = dma.hbm_to_vmem [thread:$0]  %s0, 512, %s22, [#allocation3], 128, 128, 8
    $region5: #{tpu_custom_call.1} parent=1 // pred_fallthru
      _
    // Predicated region
    $region6: #{tpu_custom_call.1} parent=1 // pred_check
      _
    $region7: #{tpu_custom_call.1} parent=1 // pred_check_branch
      %29 = sbr.rel (0) target = $region9
    $region8: #{tpu_custom_call.1} parent=1 // pred_region
      %s31 = ssub.s32 512, 512
      %32 = vsyncadd [#allocation6], %s31
      %s33 = sshll.u32 [#allocation5], 4
      %s34 = int_to_ptr.vmem [resolvable:$true] %s33
      %39 = dma.hbm_to_vmem [thread:$0]  %s1, 512, %s34, [#allocation6], 128, 128, 8
    $region9: #{tpu_custom_call.1} parent=1 // pred_fallthru
      _
    // Predicated region
    $region10: #{tpu_custom_call.1} parent=1 // pred_check
      _
    $region11: #{tpu_custom_call.1} parent=1 // pred_check_branch
      %41 = sbr.rel (0) target = $region13
    $region12: #{tpu_custom_call.1} parent=1 // pred_region
      %s43 = ssub.s32 512, 512
      %44 = vsyncadd [#allocation6], %s43
      %s45 = sshll.u32 [#allocation7], 4
      %s46 = int_to_ptr.vmem [resolvable:$true] %s45
      %51 = dma.hbm_to_vmem [thread:$0]  %s2, 512, %s46, [#allocation6], 128, 128, 8
    $region13: #{tpu_custom_call.1} parent=1 // pred_fallthru
      _
    // Predicated region
    $region14: #{tpu_custom_call.1} parent=1 // pred_check
      _
    $region15: #{tpu_custom_call.1} parent=1 // pred_check_branch
      %53 = sbr.rel (0) target = $region17
    $region16: #{tpu_custom_call.1} parent=1 // pred_region
      %s55 = ssub.s32 6144, 6144
      %56 = vsyncadd [#allocation9], %s55
      %s57 = sshll.u32 [#allocation8], 4
      %s58 = int_to_ptr.vmem [resolvable:$true] %s57
      %63 = dma.hbm_to_vmem [thread:$0]  %s3, 6144, %s58, [#allocation9], 128, 128, 8
    $region17: #{tpu_custom_call.1} parent=1 // pred_fallthru
      _
    // Predicated region
    $region18: #{tpu_custom_call.1} parent=1 // pred_check
      _
    $region19: #{tpu_custom_call.1} parent=1 // pred_check_branch
      %65 = sbr.rel (0) target = $region21
    $region20: #{tpu_custom_call.1} parent=1 // pred_region
      _
    $region21: #{tpu_custom_call.1} parent=1 // pred_fallthru
      _
    // Predicated region
    $region22: #{tpu_custom_call.1} parent=1 // pred_check
      _
    $region23: #{tpu_custom_call.1} parent=1 // pred_check_branch
      %67 = sbr.rel (0) target = $region25
    $region24: #{tpu_custom_call.1} parent=1 // pred_region
      %s69 = ssub.s32 6144, 6144
      %70 = vsyncadd [#allocation9], %s69
      %s71 = sshll.u32 [#allocation10], 4
      %s72 = int_to_ptr.vmem [resolvable:$true] %s71
      %77 = dma.hbm_to_vmem [thread:$0]  %s5, 6144, %s72, [#allocation9], 128, 128, 8
    $region25: #{tpu_custom_call.1} parent=1 // pred_fallthru
      _
    // Predicated region
    $region26: #{tpu_custom_call.1} parent=1 // pred_check
      _
    $region27: #{tpu_custom_call.1} parent=1 // pred_check_branch
      %79 = sbr.rel (0) target = $region29
    $region28: #{tpu_custom_call.1} parent=1 // pred_region
      _
    $region29: #{tpu_custom_call.1} parent=1 // pred_fallthru
      _
    // Predicated region
    $region30: #{tpu_custom_call.1} parent=1 // pred_check
      _
    $region31: #{tpu_custom_call.1} parent=1 // pred_check_branch
      %81 = sbr.rel (0) target = $region33
    $region32: #{tpu_custom_call.1} parent=1 // pred_region
      %82 = dma.done [#allocation3], 512
    $region33: #{tpu_custom_call.1} parent=1 // pred_fallthru
      _
    // Predicated region
    $region34: #{tpu_custom_call.1} parent=1 // pred_check
      _
    $region35: #{tpu_custom_call.1} parent=1 // pred_check_branch
      %84 = sbr.rel (0) target = $region37
    $region36: #{tpu_custom_call.1} parent=1 // pred_region
      %85 = dma.done [#allocation6], 512
    $region37: #{tpu_custom_call.1} parent=1 // pred_fallthru
      _
    // Predicated region
    $region38: #{tpu_custom_call.1} parent=1 // pred_check
      _
    $region39: #{tpu_custom_call.1} parent=1 // pred_check_branch
      %87 = sbr.rel (0) target = $region41
    $region40: #{tpu_custom_call.1} parent=1 // pred_region
      %88 = dma.done [#allocation6], 512
    $region41: #{tpu_custom_call.1} parent=1 // pred_fallthru
      _
    // Predicated region
    $region42: #{tpu_custom_call.1} parent=1 // pred_check
      _
    $region43: #{tpu_custom_call.1} parent=1 // pred_check_branch
      %90 = sbr.rel (0) target = $region45
    $region44: #{tpu_custom_call.1} parent=1 // pred_region
      %91 = dma.done [#allocation9], 6144
    $region45: #{tpu_custom_call.1} parent=1 // pred_fallthru
      _
    // Predicated region
    $region46: #{tpu_custom_call.1} parent=1 // pred_check
      _
    $region47: #{tpu_custom_call.1} parent=1 // pred_check_branch
      %93 = sbr.rel (0) target = $region49
    $region48: #{tpu_custom_call.1} parent=1 // pred_region
      %94 = dma.done [#allocation9], 6144
    $region49: #{tpu_custom_call.1} parent=1 // pred_fallthru
      _
    %v95 = vld [vmem:[#allocation2] sm:$0xff]
    %v96 = vld [vmem:[#allocation2 + $0x8] sm:$0xff]
    %v97 = vld [vmem:[#allocation2 + $0x10] sm:$0xff]
    %v98 = vld [vmem:[#allocation2 + $0x18] sm:$0xff]
    %v99 = vld [vmem:[#allocation5] sm:$0xff]
    %v100 = vld [vmem:[#allocation5 + $0x8] sm:$0xff]
    %v101 = vld [vmem:[#allocation5 + $0x10] sm:$0xff]
    %v102 = vld [vmem:[#allocation5 + $0x18] sm:$0xff]
    %v103 = vld [vmem:[#allocation7] sm:$0xff]
    %v104 = vld [vmem:[#allocation7 + $0x8] sm:$0xff]
    %v105 = vld [vmem:[#allocation7 + $0x10] sm:$0xff]
    %v106 = vld [vmem:[#allocation7 + $0x18] sm:$0xff]
    %vm107 = vcmask 261120
    %v109 = vsel %vm107, %v99, 0
    %v112 = vsel %vm107, %v100, 0
    %v115 = vsel %vm107, %v101, 0
    %v118 = vsel %vm107, %v102, 0
    %120 = vmatprep.subr.mxu0 0.0
    %121 = vmatpush1.msra.mxu0 0.0
    %122 = vmatprep.subr.mxu0 0.0
    %123 = vmatpush1.msra.mxu0 0.0
    %124 = vmatprep.subr.mxu0 0.0
    %125 = vmatpush1.msra.mxu0 0.0
    %126 = vmatprep.subr.mxu0 0.0
    %127 = vmatpush1.msra.mxu0 0.0
    %128 = vmatprep.subr.mxu0 0.0
    %129 = vmatpush1.msra.mxu0 0.0
    %130 = vmatprep.subr.mxu0 0.0
    %131 = vmatpush1.msra.mxu0 0.0
    %132 = vmatprep.subr.mxu0 0.0
    %133 = vmatpush1.msra.mxu0 0.0
    %134 = vmatprep.subr.mxu0 0.0
    %135 = vmatpush1.msra.mxu0 0.0
    %136 = vmatprep.subr.mxu0 0.0
    %137 = vmatpush1.msra.mxu0 0.0
    %138 = vmatprep.subr.mxu0 0.0
    %139 = vmatpush1.msra.mxu0 0.0
    %140 = vmatprep.subr.mxu0 0.0
    %141 = vmatpush1.msra.mxu0 0.0
    %142 = vmatprep.subr.mxu0 0.0
    %143 = vmatpush1.msra.mxu0 0.0
    %144 = vmatprep.subr.mxu0 0.0
    %145 = vmatpush1.msra.mxu0 %v98
    %146 = vmatprep.subr.mxu0 0.0
    %147 = vmatpush1.msra.mxu0 %v97
    %148 = vmatprep.subr.mxu0 0.0
    %149 = vmatpush1.msra.mxu0 %v96
    %150 = vmatprep.subr.mxu0 0.0
    %151 = vmatpush1.msra.mxu0 %v95
    %152 = vmatprep.subr.mxu0 0.0
    %153 = vmatpush2.msra.mxu0 0.0
    %154 = vmatprep.subr.mxu0 0.0
    %155 = vmatpush2.msra.mxu0 0.0
    %156 = vmatprep.subr.mxu0 0.0
    %157 = vmatpush2.msra.mxu0 0.0
    %158 = vmatprep.subr.mxu0 0.0
    %159 = vmatpush2.msra.mxu0 0.0
    %160 = vmatprep.subr.mxu0 0.0
    %161 = vmatpush2.msra.mxu0 0.0
    %162 = vmatprep.subr.mxu0 0.0
    %163 = vmatpush2.msra.mxu0 0.0
    %164 = vmatprep.subr.mxu0 0.0
    %165 = vmatpush2.msra.mxu0 0.0
    %166 = vmatprep.subr.mxu0 0.0
    %167 = vmatpush2.msra.mxu0 0.0
    %168 = vmatprep.subr.mxu0 0.0
    %169 = vmatpush2.msra.mxu0 0.0
    %170 = vmatprep.subr.mxu0 0.0
    %171 = vmatpush2.msra.mxu0 0.0
    %172 = vmatprep.subr.mxu0 0.0
    %173 = vmatpush2.msra.mxu0 0.0
    %174 = vmatprep.subr.mxu0 0.0
    %175 = vmatpush2.msra.mxu0 0.0
    %176 = vmatprep.subr.mxu0 0.0
    %177 = vmatpush2.msra.mxu0 0.0
    %178 = vmatprep.subr.mxu0 0.0
    %179 = vmatpush2.msra.mxu0 0.0
    %180 = vmatprep.subr.mxu0 0.0
    %181 = vmatpush2.msra.mxu0 0.0
    %182 = vmatprep.subr.mxu0 0.0
    %183 = vmatpush2.msra.mxu0 0.0
    %184 = vmatprep.mubr.f32.mxu0 0.0
    %185 = vmatmul.mubr.f32.gmra.mxu0 %v109
    %v186 = vpop.f32.mrf.mxu0
    %v187 = vadd.f32 0.0, %v186
    %v188 = vpop.f32.mrf.mxu0
    %189 = vmatprep.mubr.f32.mxu0 0.0
    %190 = vmatmul.mubr.f32.gmra.mxu0 %v112
    %v191 = vpop.f32.mrf.mxu0
    %v192 = vadd.f32 0.0, %v191
    %v193 = vpop.f32.mrf.mxu0
    %194 = vmatprep.mubr.f32.mxu0 0.0
    %195 = vmatmul.mubr.f32.gmra.mxu0 %v115
    %v196 = vpop.f32.mrf.mxu0
    %v197 = vadd.f32 0.0, %v196
    %v198 = vpop.f32.mrf.mxu0
    %199 = vmatprep.mubr.f32.mxu0 0.0
    %200 = vmatmul.mubr.f32.gmra.mxu0 %v118
    %v201 = vpop.f32.mrf.mxu0
    %v202 = vadd.f32 0.0, %v201
    %v203 = vpop.f32.mrf.mxu0
    %204 = vdwg.mxu0
    %v206 = vsel %vm107, %v103, 0
    %v209 = vsel %vm107, %v104, 0
    %v212 = vsel %vm107, %v105, 0
    %v215 = vsel %vm107, %v106, 0
    %217 = vmatprep.subr.mxu0 0.0
    %218 = vmatpush1.msra.mxu0 0.0
    %219 = vmatprep.subr.mxu0 0.0
    %220 = vmatpush1.msra.mxu0 0.0
    %221 = vmatprep.subr.mxu0 0.0
    %222 = vmatpush1.msra.mxu0 0.0
    %223 = vmatprep.subr.mxu0 0.0
    %224 = vmatpush1.msra.mxu0 0.0
    %225 = vmatprep.subr.mxu0 0.0
    %226 = vmatpush1.msra.mxu0 0.0
    %227 = vmatprep.subr.mxu0 0.0
    %228 = vmatpush1.msra.mxu0 0.0
    %229 = vmatprep.subr.mxu0 0.0
    %230 = vmatpush1.msra.mxu0 0.0
    %231 = vmatprep.subr.mxu0 0.0
    %232 = vmatpush1.msra.mxu0 0.0
    %233 = vmatprep.subr.mxu0 0.0
    %234 = vmatpush1.msra.mxu0 0.0
    %235 = vmatprep.subr.mxu0 0.0
    %236 = vmatpush1.msra.mxu0 0.0
    %237 = vmatprep.subr.mxu0 0.0
    %238 = vmatpush1.msra.mxu0 0.0
    %239 = vmatprep.subr.mxu0 0.0
    %240 = vmatpush1.msra.mxu0 0.0
    %241 = vmatprep.subr.mxu0 0.0
    %242 = vmatpush1.msra.mxu0 %v98
    %243 = vmatprep.subr.mxu0 0.0
    %244 = vmatpush1.msra.mxu0 %v97
    %245 = vmatprep.subr.mxu0 0.0
    %246 = vmatpush1.msra.mxu0 %v96
    %247 = vmatprep.subr.mxu0 0.0
    %248 = vmatpush1.msra.mxu0 %v95
    %249 = vmatprep.subr.mxu0 0.0
    %250 = vmatpush2.msra.mxu0 0.0
    %251 = vmatprep.subr.mxu0 0.0
    %252 = vmatpush2.msra.mxu0 0.0
    %253 = vmatprep.subr.mxu0 0.0
    %254 = vmatpush2.msra.mxu0 0.0
    %255 = vmatprep.subr.mxu0 0.0
    %256 = vmatpush2.msra.mxu0 0.0
    %257 = vmatprep.subr.mxu0 0.0
    %258 = vmatpush2.msra.mxu0 0.0
    %259 = vmatprep.subr.mxu0 0.0
    %260 = vmatpush2.msra.mxu0 0.0
    %261 = vmatprep.subr.mxu0 0.0
    %262 = vmatpush2.msra.mxu0 0.0
    %263 = vmatprep.subr.mxu0 0.0
    %264 = vmatpush2.msra.mxu0 0.0
    %265 = vmatprep.subr.mxu0 0.0
    %266 = vmatpush2.msra.mxu0 0.0
    %267 = vmatprep.subr.mxu0 0.0
    %268 = vmatpush2.msra.mxu0 0.0
    %269 = vmatprep.subr.mxu0 0.0
    %270 = vmatpush2.msra.mxu0 0.0
    %271 = vmatprep.subr.mxu0 0.0
    %272 = vmatpush2.msra.mxu0 0.0
    %273 = vmatprep.subr.mxu0 0.0
    %274 = vmatpush2.msra.mxu0 0.0
    %275 = vmatprep.subr.mxu0 0.0
    %276 = vmatpush2.msra.mxu0 0.0
    %277 = vmatprep.subr.mxu0 0.0
    %278 = vmatpush2.msra.mxu0 0.0
    %279 = vmatprep.subr.mxu0 0.0
    %280 = vmatpush2.msra.mxu0 0.0
    %281 = vmatprep.mubr.f32.mxu0 0.0
    %282 = vmatmul.mubr.f32.gmra.mxu0 %v206
    %v283 = vpop.f32.mrf.mxu0
    %v284 = vadd.f32 0.0, %v283
    %v285 = vpop.f32.mrf.mxu0
    %286 = vmatprep.mubr.f32.mxu0 0.0
    %287 = vmatmul.mubr.f32.gmra.mxu0 %v209
    %v288 = vpop.f32.mrf.mxu0
    %v289 = vadd.f32 0.0, %v288
    %v290 = vpop.f32.mrf.mxu0
    %291 = vmatprep.mubr.f32.mxu0 0.0
    %292 = vmatmul.mubr.f32.gmra.mxu0 %v212
    %v293 = vpop.f32.mrf.mxu0
    %v294 = vadd.f32 0.0, %v293
    %v295 = vpop.f32.mrf.mxu0
    %296 = vmatprep.mubr.f32.mxu0 0.0
    %297 = vmatmul.mubr.f32.gmra.mxu0 %v215
    %v298 = vpop.f32.mrf.mxu0
    %v299 = vadd.f32 0.0, %v298
    %v300 = vpop.f32.mrf.mxu0
    %301 = vdwg.mxu0
    %v302 = vld [vmem:[#allocation8] sm:$0xff]
    %v303 = vld [vmem:[#allocation8 + $0x8] sm:$0xff]
    %v304 = vld [vmem:[#allocation8 + $0x10] sm:$0xff]
    %v305 = vld [vmem:[#allocation8 + $0x18] sm:$0xff]
    %v306 = vld [vmem:[#allocation8 + $0x20] sm:$0xff]
    %v307 = vld [vmem:[#allocation8 + $0x28] sm:$0xff]
    %v308 = vld [vmem:[#allocation8 + $0x30] sm:$0xff]
    %v309 = vld [vmem:[#allocation8 + $0x38] sm:$0xff]
    %v310 = vld [vmem:[#allocation8 + $0x40] sm:$0xff]
    %v311 = vld [vmem:[#allocation8 + $0x48] sm:$0xff]
    %v312 = vld [vmem:[#allocation8 + $0x50] sm:$0xff]
    %v313 = vld [vmem:[#allocation8 + $0x58] sm:$0xff]
    %v314 = vld [vmem:[#allocation8 + $0x60] sm:$0xff]
    %v315 = vld [vmem:[#allocation8 + $0x68] sm:$0xff]
    %v316 = vld [vmem:[#allocation8 + $0x70] sm:$0xff]
    %v317 = vld [vmem:[#allocation8 + $0x78] sm:$0xff]
    %v318 = vld [vmem:[#allocation8 + $0x80] sm:$0xff]
    %v319 = vld [vmem:[#allocation8 + $0x88] sm:$0xff]
    %v320 = vld [vmem:[#allocation8 + $0x90] sm:$0xff]
    %v321 = vld [vmem:[#allocation8 + $0x98] sm:$0xff]
    %v322 = vld [vmem:[#allocation8 + $0xa0] sm:$0xff]
    %v323 = vld [vmem:[#allocation8 + $0xa8] sm:$0xff]
    %v324 = vld [vmem:[#allocation8 + $0xb0] sm:$0xff]
    %v325 = vld [vmem:[#allocation8 + $0xb8] sm:$0xff]
    %v326 = vld [vmem:[#allocation8 + $0xc0] sm:$0xff]
    %v327 = vld [vmem:[#allocation8 + $0xc8] sm:$0xff]
    %v328 = vld [vmem:[#allocation8 + $0xd0] sm:$0xff]
    %v329 = vld [vmem:[#allocation8 + $0xd8] sm:$0xff]
    %v330 = vld [vmem:[#allocation8 + $0xe0] sm:$0xff]
    %v331 = vld [vmem:[#allocation8 + $0xe8] sm:$0xff]
    %v332 = vld [vmem:[#allocation8 + $0xf0] sm:$0xff]
    %v333 = vld [vmem:[#allocation8 + $0xf8] sm:$0xff]
    %v334 = vld [vmem:[#allocation8 + $0x100] sm:$0xff]
    %v335 = vld [vmem:[#allocation8 + $0x108] sm:$0xff]
    %v336 = vld [vmem:[#allocation8 + $0x110] sm:$0xff]
    %v337 = vld [vmem:[#allocation8 + $0x118] sm:$0xff]
    %v338 = vld [vmem:[#allocation8 + $0x120] sm:$0xff]
    %v339 = vld [vmem:[#allocation8 + $0x128] sm:$0xff]
    %v340 = vld [vmem:[#allocation8 + $0x130] sm:$0xff]
    %v341 = vld [vmem:[#allocation8 + $0x138] sm:$0xff]
    %v342 = vld [vmem:[#allocation8 + $0x140] sm:$0xff]
    %v343 = vld [vmem:[#allocation8 + $0x148] sm:$0xff]
    %v344 = vld [vmem:[#allocation8 + $0x150] sm:$0xff]
    %v345 = vld [vmem:[#allocation8 + $0x158] sm:$0xff]
    %v346 = vld [vmem:[#allocation8 + $0x160] sm:$0xff]
    %v347 = vld [vmem:[#allocation8 + $0x168] sm:$0xff]
    %v348 = vld [vmem:[#allocation8 + $0x170] sm:$0xff]
    %v349 = vld [vmem:[#allocation8 + $0x178] sm:$0xff]
    %v350 = vld [vmem:[%s4] sm:$0x1]
    %v352 = vlaneseq
    %v353 = vshrl.u32 %v352, 7
    %v354 = vsub.s32 0, %v353
    %v355 = vrot.slane %v350, %v354
    %357 = vmatprep.subr.mxu0 0.0
    %358 = vmatpush1.msra.mxu0 %v317
    %359 = vmatprep.subr.mxu0 0.0
    %360 = vmatpush1.msra.mxu0 %v316
    %361 = vmatprep.subr.mxu0 0.0
    %362 = vmatpush1.msra.mxu0 %v315
    %363 = vmatprep.subr.mxu0 0.0
    %364 = vmatpush1.msra.mxu0 %v314
    %365 = vmatprep.subr.mxu0 0.0
    %366 = vmatpush1.msra.mxu0 %v313
    %367 = vmatprep.subr.mxu0 0.0
    %368 = vmatpush1.msra.mxu0 %v312
    %369 = vmatprep.subr.mxu0 0.0
    %370 = vmatpush1.msra.mxu0 %v311
    %371 = vmatprep.subr.mxu0 0.0
    %372 = vmatpush1.msra.mxu0 %v310
    %373 = vmatprep.subr.mxu0 0.0
    %374 = vmatpush1.msra.mxu0 %v309
    %375 = vmatprep.subr.mxu0 0.0
    %376 = vmatpush1.msra.mxu0 %v308
    %377 = vmatprep.subr.mxu0 0.0
    %378 = vmatpush1.msra.mxu0 %v307
    %379 = vmatprep.subr.mxu0 0.0
    %380 = vmatpush1.msra.mxu0 %v306
    %381 = vmatprep.subr.mxu0 0.0
    %382 = vmatpush1.msra.mxu0 %v305
    %383 = vmatprep.subr.mxu0 0.0
    %384 = vmatpush1.msra.mxu0 %v304
    %385 = vmatprep.subr.mxu0 0.0
    %386 = vmatpush1.msra.mxu0 %v303
    %387 = vmatprep.subr.mxu0 0.0
    %388 = vmatpush1.msra.mxu0 %v302
    %389 = vmatprep.subr.mxu0 0.0
    %390 = vmatpush2.msra.mxu0 %v333
    %391 = vmatprep.subr.mxu0 0.0
    %392 = vmatpush2.msra.mxu0 %v332
    %393 = vmatprep.subr.mxu0 0.0
    %394 = vmatpush2.msra.mxu0 %v331
    %395 = vmatprep.subr.mxu0 0.0
    %396 = vmatpush2.msra.mxu0 %v330
    %397 = vmatprep.subr.mxu0 0.0
    %398 = vmatpush2.msra.mxu0 %v329
    %399 = vmatprep.subr.mxu0 0.0
    %400 = vmatpush2.msra.mxu0 %v328
    %401 = vmatprep.subr.mxu0 0.0
    %402 = vmatpush2.msra.mxu0 %v327
    %403 = vmatprep.subr.mxu0 0.0
    %404 = vmatpush2.msra.mxu0 %v326
    %405 = vmatprep.subr.mxu0 0.0
    %406 = vmatpush2.msra.mxu0 %v325
    %407 = vmatprep.subr.mxu0 0.0
    %408 = vmatpush2.msra.mxu0 %v324
    %409 = vmatprep.subr.mxu0 0.0
    %410 = vmatpush2.msra.mxu0 %v323
    %411 = vmatprep.subr.mxu0 0.0
    %412 = vmatpush2.msra.mxu0 %v322
    %413 = vmatprep.subr.mxu0 0.0
    %414 = vmatpush2.msra.mxu0 %v321
    %415 = vmatprep.subr.mxu0 0.0
    %416 = vmatpush2.msra.mxu0 %v320
    %417 = vmatprep.subr.mxu0 0.0
    %418 = vmatpush2.msra.mxu0 %v319
    %419 = vmatprep.subr.mxu0 0.0
    %420 = vmatpush2.msra.mxu0 %v318
    %421 = vmatprep.mubr.f32.mxu0 %v95
    %422 = vmatmul.mubr.f32.gmra.mxu0 %v187
    %v423 = vpop.f32.mrf.mxu0
    %v424 = vadd.f32 %v355, %v423
    %v425 = vpop.f32.mrf.mxu0
    %426 = vmatprep.mubr.f32.mxu0 %v96
    %427 = vmatmul.mubr.f32.gmra.mxu0 %v192
    %v428 = vpop.f32.mrf.mxu0
    %v429 = vadd.f32 %v355, %v428
    %v430 = vpop.f32.mrf.mxu0
    %431 = vmatprep.mubr.f32.mxu0 %v97
    %432 = vmatmul.mubr.f32.gmra.mxu0 %v197
    %v433 = vpop.f32.mrf.mxu0
    %v434 = vadd.f32 %v355, %v433
    %v435 = vpop.f32.mrf.mxu0
    %436 = vmatprep.mubr.f32.mxu0 %v98
    %437 = vmatmul.mubr.f32.gmra.mxu0 %v202
    %v438 = vpop.f32.mrf.mxu0
    %v439 = vadd.f32 %v355, %v438
    %v440 = vpop.f32.mrf.mxu0
    %441 = vdwg.mxu0
    %442 = vmatprep.subr.mxu0 0.0
    %443 = vmatpush1.msra.mxu0 %v349
    %444 = vmatprep.subr.mxu0 0.0
    %445 = vmatpush1.msra.mxu0 %v348
    %446 = vmatprep.subr.mxu0 0.0
    %447 = vmatpush1.msra.mxu0 %v347
    %448 = vmatprep.subr.mxu0 0.0
    %449 = vmatpush1.msra.mxu0 %v346
    %450 = vmatprep.subr.mxu0 0.0
    %451 = vmatpush1.msra.mxu0 %v345
    %452 = vmatprep.subr.mxu0 0.0
    %453 = vmatpush1.msra.mxu0 %v344
    %454 = vmatprep.subr.mxu0 0.0
    %455 = vmatpush1.msra.mxu0 %v343
    %456 = vmatprep.subr.mxu0 0.0
    %457 = vmatpush1.msra.mxu0 %v342
    %458 = vmatprep.subr.mxu0 0.0
    %459 = vmatpush1.msra.mxu0 %v341
    %460 = vmatprep.subr.mxu0 0.0
    %461 = vmatpush1.msra.mxu0 %v340
    %462 = vmatprep.subr.mxu0 0.0
    %463 = vmatpush1.msra.mxu0 %v339
    %464 = vmatprep.subr.mxu0 0.0
    %465 = vmatpush1.msra.mxu0 %v338
    %466 = vmatprep.subr.mxu0 0.0
    %467 = vmatpush1.msra.mxu0 %v337
    %468 = vmatprep.subr.mxu0 0.0
    %469 = vmatpush1.msra.mxu0 %v336
    %470 = vmatprep.subr.mxu0 0.0
    %471 = vmatpush1.msra.mxu0 %v335
    %472 = vmatprep.subr.mxu0 0.0
    %473 = vmatpush1.msra.mxu0 %v334
    %474 = vmatprep.subr.mxu0 0.0
    %475 = vmatpush2.msra.mxu0 0.0
    %476 = vmatprep.subr.mxu0 0.0
    %477 = vmatpush2.msra.mxu0 0.0
    %478 = vmatprep.subr.mxu0 0.0
    %479 = vmatpush2.msra.mxu0 0.0
    %480 = vmatprep.subr.mxu0 0.0
    %481 = vmatpush2.msra.mxu0 0.0
    %482 = vmatprep.subr.mxu0 0.0
    %483 = vmatpush2.msra.mxu0 0.0
    %484 = vmatprep.subr.mxu0 0.0
    %485 = vmatpush2.msra.mxu0 0.0
    %486 = vmatprep.subr.mxu0 0.0
    %487 = vmatpush2.msra.mxu0 0.0
    %488 = vmatprep.subr.mxu0 0.0
    %489 = vmatpush2.msra.mxu0 0.0
    %490 = vmatprep.subr.mxu0 0.0
    %491 = vmatpush2.msra.mxu0 0.0
    %492 = vmatprep.subr.mxu0 0.0
    %493 = vmatpush2.msra.mxu0 0.0
    %494 = vmatprep.subr.mxu0 0.0
    %495 = vmatpush2.msra.mxu0 0.0
    %496 = vmatprep.subr.mxu0 0.0
    %497 = vmatpush2.msra.mxu0 0.0
    %498 = vmatprep.subr.mxu0 0.0
    %499 = vmatpush2.msra.mxu0 0.0
    %500 = vmatprep.subr.mxu0 0.0
    %501 = vmatpush2.msra.mxu0 0.0
    %502 = vmatprep.subr.mxu0 0.0
    %503 = vmatpush2.msra.mxu0 0.0
    %504 = vmatprep.subr.mxu0 0.0
    %505 = vmatpush2.msra.mxu0 0.0
    %506 = vmatprep.mubr.f32.mxu0 0.0
    %507 = vmatmul.mubr.f32.gmra.mxu0 %v284
    %v508 = vpop.f32.mrf.mxu0
    %v509 = vadd.f32 %v424, %v508
    %v510 = vpop.f32.mrf.mxu0
    %511 = vmatprep.mubr.f32.mxu0 0.0
    %512 = vmatmul.mubr.f32.gmra.mxu0 %v289
    %v513 = vpop.f32.mrf.mxu0
    %v514 = vadd.f32 %v429, %v513
    %v515 = vpop.f32.mrf.mxu0
    %516 = vmatprep.mubr.f32.mxu0 0.0
    %517 = vmatmul.mubr.f32.gmra.mxu0 %v294
    %v518 = vpop.f32.mrf.mxu0
    %v519 = vadd.f32 %v434, %v518
    %v520 = vpop.f32.mrf.mxu0
    %521 = vmatprep.mubr.f32.mxu0 0.0
    %522 = vmatmul.mubr.f32.gmra.mxu0 %v299
    %v523 = vpop.f32.mrf.mxu0
    %v524 = vadd.f32 %v439, %v523
    %v525 = vpop.f32.mrf.mxu0
    %526 = vdwg.mxu0
    %v527 = vmax.f32 %v509, 0.0
    %v528 = vmax.f32 %v514, 0.0
    %v529 = vmax.f32 %v519, 0.0
    %v530 = vmax.f32 %v524, 0.0
    %531 = vmatprep.subr.mxu0 0.0
    %532 = vmatpush1.msra.mxu0 0.0
    %533 = vmatprep.subr.mxu0 0.0
    %534 = vmatpush1.msra.mxu0 0.0
    %535 = vmatprep.subr.mxu0 0.0
    %536 = vmatpush1.msra.mxu0 0.0
    %537 = vmatprep.subr.mxu0 0.0
    %538 = vmatpush1.msra.mxu0 0.0
    %539 = vmatprep.subr.mxu0 0.0
    %540 = vmatpush1.msra.mxu0 0.0
    %541 = vmatprep.subr.mxu0 0.0
    %542 = vmatpush1.msra.mxu0 0.0
    %543 = vmatprep.subr.mxu0 0.0
    %544 = vmatpush1.msra.mxu0 0.0
    %545 = vmatprep.subr.mxu0 0.0
    %546 = vmatpush1.msra.mxu0 0.0
    %547 = vmatprep.subr.mxu0 0.0
    %548 = vmatpush1.msra.mxu0 0.0
    %549 = vmatprep.subr.mxu0 0.0
    %550 = vmatpush1.msra.mxu0 0.0
    %551 = vmatprep.subr.mxu0 0.0
    %552 = vmatpush1.msra.mxu0 0.0
    %553 = vmatprep.subr.mxu0 0.0
    %554 = vmatpush1.msra.mxu0 0.0
    %555 = vmatprep.subr.mxu0 0.0
    %556 = vmatpush1.msra.mxu0 %v530
    %557 = vmatprep.subr.mxu0 0.0
    %558 = vmatpush1.msra.mxu0 %v529
    %559 = vmatprep.subr.mxu0 0.0
    %560 = vmatpush1.msra.mxu0 %v528
    %561 = vmatprep.subr.mxu0 0.0
    %562 = vmatpush1.msra.mxu0 %v527
    %563 = vmatprep.subr.mxu0 0.0
    %564 = vmatpush2.msra.mxu0 0.0
    %565 = vmatprep.subr.mxu0 0.0
    %566 = vmatpush2.msra.mxu0 0.0
    %567 = vmatprep.subr.mxu0 0.0
    %568 = vmatpush2.msra.mxu0 0.0
    %569 = vmatprep.subr.mxu0 0.0
    %570 = vmatpush2.msra.mxu0 0.0
    %571 = vmatprep.subr.mxu0 0.0
    %572 = vmatpush2.msra.mxu0 0.0
    %573 = vmatprep.subr.mxu0 0.0
    %574 = vmatpush2.msra.mxu0 0.0
    %575 = vmatprep.subr.mxu0 0.0
    %576 = vmatpush2.msra.mxu0 0.0
    %577 = vmatprep.subr.mxu0 0.0
    %578 = vmatpush2.msra.mxu0 0.0
    %579 = vmatprep.subr.mxu0 0.0
    %580 = vmatpush2.msra.mxu0 0.0
    %581 = vmatprep.subr.mxu0 0.0
    %582 = vmatpush2.msra.mxu0 0.0
    %583 = vmatprep.subr.mxu0 0.0
    %584 = vmatpush2.msra.mxu0 0.0
    %585 = vmatprep.subr.mxu0 0.0
    %586 = vmatpush2.msra.mxu0 0.0
    %587 = vmatprep.subr.mxu0 0.0
    %588 = vmatpush2.msra.mxu0 0.0
    %589 = vmatprep.subr.mxu0 0.0
    %590 = vmatpush2.msra.mxu0 0.0
    %591 = vmatprep.subr.mxu0 0.0
    %592 = vmatpush2.msra.mxu0 0.0
    %593 = vmatprep.subr.mxu0 0.0
    %594 = vmatpush2.msra.mxu0 0.0
    %595 = vmatprep.mubr.f32.mxu0 0.0
    %596 = vmatmul.mubr.f32.gmra.mxu0 %v109
    %v597 = vpop.f32.mrf.mxu0
    %v598 = vadd.f32 0.0, %v597
    %v599 = vpop.f32.mrf.mxu0
    %600 = vmatprep.mubr.f32.mxu0 0.0
    %601 = vmatmul.mubr.f32.gmra.mxu0 %v112
    %v602 = vpop.f32.mrf.mxu0
    %v603 = vadd.f32 0.0, %v602
    %v604 = vpop.f32.mrf.mxu0
    %605 = vmatprep.mubr.f32.mxu0 0.0
    %606 = vmatmul.mubr.f32.gmra.mxu0 %v115
    %v607 = vpop.f32.mrf.mxu0
    %v608 = vadd.f32 0.0, %v607
    %v609 = vpop.f32.mrf.mxu0
    %610 = vmatprep.mubr.f32.mxu0 0.0
    %611 = vmatmul.mubr.f32.gmra.mxu0 %v118
    %v612 = vpop.f32.mrf.mxu0
    %v613 = vadd.f32 0.0, %v612
    %v614 = vpop.f32.mrf.mxu0
    %615 = vdwg.mxu0
    %616 = vmatprep.subr.mxu0 0.0
    %617 = vmatpush1.msra.mxu0 0.0
    %618 = vmatprep.subr.mxu0 0.0
    %619 = vmatpush1.msra.mxu0 0.0
    %620 = vmatprep.subr.mxu0 0.0
    %621 = vmatpush1.msra.mxu0 0.0
    %622 = vmatprep.subr.mxu0 0.0
    %623 = vmatpush1.msra.mxu0 0.0
    %624 = vmatprep.subr.mxu0 0.0
    %625 = vmatpush1.msra.mxu0 0.0
    %626 = vmatprep.subr.mxu0 0.0
    %627 = vmatpush1.msra.mxu0 0.0
    %628 = vmatprep.subr.mxu0 0.0
    %629 = vmatpush1.msra.mxu0 0.0
    %630 = vmatprep.subr.mxu0 0.0
    %631 = vmatpush1.msra.mxu0 0.0
    %632 = vmatprep.subr.mxu0 0.0
    %633 = vmatpush1.msra.mxu0 0.0
    %634 = vmatprep.subr.mxu0 0.0
    %635 = vmatpush1.msra.mxu0 0.0
    %636 = vmatprep.subr.mxu0 0.0
    %637 = vmatpush1.msra.mxu0 0.0
    %638 = vmatprep.subr.mxu0 0.0
    %639 = vmatpush1.msra.mxu0 0.0
    %640 = vmatprep.subr.mxu0 0.0
    %641 = vmatpush1.msra.mxu0 %v530
    %642 = vmatprep.subr.mxu0 0.0
    %643 = vmatpush1.msra.mxu0 %v529
    %644 = vmatprep.subr.mxu0 0.0
    %645 = vmatpush1.msra.mxu0 %v528
    %646 = vmatprep.subr.mxu0 0.0
    %647 = vmatpush1.msra.mxu0 %v527
    %648 = vmatprep.subr.mxu0 0.0
    %649 = vmatpush2.msra.mxu0 0.0
    %650 = vmatprep.subr.mxu0 0.0
    %651 = vmatpush2.msra.mxu0 0.0
    %652 = vmatprep.subr.mxu0 0.0
    %653 = vmatpush2.msra.mxu0 0.0
    %654 = vmatprep.subr.mxu0 0.0
    %655 = vmatpush2.msra.mxu0 0.0
    %656 = vmatprep.subr.mxu0 0.0
    %657 = vmatpush2.msra.mxu0 0.0
    %658 = vmatprep.subr.mxu0 0.0
    %659 = vmatpush2.msra.mxu0 0.0
    %660 = vmatprep.subr.mxu0 0.0
    %661 = vmatpush2.msra.mxu0 0.0
    %662 = vmatprep.subr.mxu0 0.0
    %663 = vmatpush2.msra.mxu0 0.0
    %664 = vmatprep.subr.mxu0 0.0
    %665 = vmatpush2.msra.mxu0 0.0
    %666 = vmatprep.subr.mxu0 0.0
    %667 = vmatpush2.msra.mxu0 0.0
    %668 = vmatprep.subr.mxu0 0.0
    %669 = vmatpush2.msra.mxu0 0.0
    %670 = vmatprep.subr.mxu0 0.0
    %671 = vmatpush2.msra.mxu0 0.0
    %672 = vmatprep.subr.mxu0 0.0
    %673 = vmatpush2.msra.mxu0 0.0
    %674 = vmatprep.subr.mxu0 0.0
    %675 = vmatpush2.msra.mxu0 0.0
    %676 = vmatprep.subr.mxu0 0.0
    %677 = vmatpush2.msra.mxu0 0.0
    %678 = vmatprep.subr.mxu0 0.0
    %679 = vmatpush2.msra.mxu0 0.0
    %680 = vmatprep.mubr.f32.mxu0 0.0
    %681 = vmatmul.mubr.f32.gmra.mxu0 %v206
    %v682 = vpop.f32.mrf.mxu0
    %v683 = vadd.f32 0.0, %v682
    %v684 = vpop.f32.mrf.mxu0
    %685 = vmatprep.mubr.f32.mxu0 0.0
    %686 = vmatmul.mubr.f32.gmra.mxu0 %v209
    %v687 = vpop.f32.mrf.mxu0
    %v688 = vadd.f32 0.0, %v687
    %v689 = vpop.f32.mrf.mxu0
    %690 = vmatprep.mubr.f32.mxu0 0.0
    %691 = vmatmul.mubr.f32.gmra.mxu0 %v212
    %v692 = vpop.f32.mrf.mxu0
    %v693 = vadd.f32 0.0, %v692
    %v694 = vpop.f32.mrf.mxu0
    %695 = vmatprep.mubr.f32.mxu0 0.0
    %696 = vmatmul.mubr.f32.gmra.mxu0 %v215
    %v697 = vpop.f32.mrf.mxu0
    %v698 = vadd.f32 0.0, %v697
    %v699 = vpop.f32.mrf.mxu0
    %700 = vdwg.mxu0
    %v701 = vld [vmem:[#allocation10] sm:$0xff]
    %v702 = vld [vmem:[#allocation10 + $0x8] sm:$0xff]
    %v703 = vld [vmem:[#allocation10 + $0x10] sm:$0xff]
    %v704 = vld [vmem:[#allocation10 + $0x18] sm:$0xff]
    %v705 = vld [vmem:[#allocation10 + $0x20] sm:$0xff]
    %v706 = vld [vmem:[#allocation10 + $0x28] sm:$0xff]
    %v707 = vld [vmem:[#allocation10 + $0x30] sm:$0xff]
    %v708 = vld [vmem:[#allocation10 + $0x38] sm:$0xff]
    %v709 = vld [vmem:[#allocation10 + $0x40] sm:$0xff]
    %v710 = vld [vmem:[#allocation10 + $0x48] sm:$0xff]
    %v711 = vld [vmem:[#allocation10 + $0x50] sm:$0xff]
    %v712 = vld [vmem:[#allocation10 + $0x58] sm:$0xff]
    %v713 = vld [vmem:[#allocation10 + $0x60] sm:$0xff]
    %v714 = vld [vmem:[#allocation10 + $0x68] sm:$0xff]
    %v715 = vld [vmem:[#allocation10 + $0x70] sm:$0xff]
    %v716 = vld [vmem:[#allocation10 + $0x78] sm:$0xff]
    %v717 = vld [vmem:[#allocation10 + $0x80] sm:$0xff]
    %v718 = vld [vmem:[#allocation10 + $0x88] sm:$0xff]
    %v719 = vld [vmem:[#allocation10 + $0x90] sm:$0xff]
    %v720 = vld [vmem:[#allocation10 + $0x98] sm:$0xff]
    %v721 = vld [vmem:[#allocation10 + $0xa0] sm:$0xff]
    %v722 = vld [vmem:[#allocation10 + $0xa8] sm:$0xff]
    %v723 = vld [vmem:[#allocation10 + $0xb0] sm:$0xff]
    %v724 = vld [vmem:[#allocation10 + $0xb8] sm:$0xff]
    %v725 = vld [vmem:[#allocation10 + $0xc0] sm:$0xff]
    %v726 = vld [vmem:[#allocation10 + $0xc8] sm:$0xff]
    %v727 = vld [vmem:[#allocation10 + $0xd0] sm:$0xff]
    %v728 = vld [vmem:[#allocation10 + $0xd8] sm:$0xff]
    %v729 = vld [vmem:[#allocation10 + $0xe0] sm:$0xff]
    %v730 = vld [vmem:[#allocation10 + $0xe8] sm:$0xff]
    %v731 = vld [vmem:[#allocation10 + $0xf0] sm:$0xff]
    %v732 = vld [vmem:[#allocation10 + $0xf8] sm:$0xff]
    %v733 = vld [vmem:[#allocation10 + $0x100] sm:$0xff]
    %v734 = vld [vmem:[#allocation10 + $0x108] sm:$0xff]
    %v735 = vld [vmem:[#allocation10 + $0x110] sm:$0xff]
    %v736 = vld [vmem:[#allocation10 + $0x118] sm:$0xff]
    %v737 = vld [vmem:[#allocation10 + $0x120] sm:$0xff]
    %v738 = vld [vmem:[#allocation10 + $0x128] sm:$0xff]
    %v739 = vld [vmem:[#allocation10 + $0x130] sm:$0xff]
    %v740 = vld [vmem:[#allocation10 + $0x138] sm:$0xff]
    %v741 = vld [vmem:[#allocation10 + $0x140] sm:$0xff]
    %v742 = vld [vmem:[#allocation10 + $0x148] sm:$0xff]
    %v743 = vld [vmem:[#allocation10 + $0x150] sm:$0xff]
    %v744 = vld [vmem:[#allocation10 + $0x158] sm:$0xff]
    %v745 = vld [vmem:[#allocation10 + $0x160] sm:$0xff]
    %v746 = vld [vmem:[#allocation10 + $0x168] sm:$0xff]
    %v747 = vld [vmem:[#allocation10 + $0x170] sm:$0xff]
    %v748 = vld [vmem:[#allocation10 + $0x178] sm:$0xff]
    %v749 = vld [vmem:[%s6] sm:$0x1]
    %v751 = vlaneseq
    %v752 = vshrl.u32 %v751, 7
    %v753 = vsub.s32 0, %v752
    %v754 = vrot.slane %v749, %v753
    %756 = vmatprep.subr.mxu0 0.0
    %757 = vmatpush1.msra.mxu0 %v716
    %758 = vmatprep.subr.mxu0 0.0
    %759 = vmatpush1.msra.mxu0 %v715
    %760 = vmatprep.subr.mxu0 0.0
    %761 = vmatpush1.msra.mxu0 %v714
    %762 = vmatprep.subr.mxu0 0.0
    %763 = vmatpush1.msra.mxu0 %v713
    %764 = vmatprep.subr.mxu0 0.0
    %765 = vmatpush1.msra.mxu0 %v712
    %766 = vmatprep.subr.mxu0 0.0
    %767 = vmatpush1.msra.mxu0 %v711
    %768 = vmatprep.subr.mxu0 0.0
    %769 = vmatpush1.msra.mxu0 %v710
    %770 = vmatprep.subr.mxu0 0.0
    %771 = vmatpush1.msra.mxu0 %v709
    %772 = vmatprep.subr.mxu0 0.0
    %773 = vmatpush1.msra.mxu0 %v708
    %774 = vmatprep.subr.mxu0 0.0
    %775 = vmatpush1.msra.mxu0 %v707
    %776 = vmatprep.subr.mxu0 0.0
    %777 = vmatpush1.msra.mxu0 %v706
    %778 = vmatprep.subr.mxu0 0.0
    %779 = vmatpush1.msra.mxu0 %v705
    %780 = vmatprep.subr.mxu0 0.0
    %781 = vmatpush1.msra.mxu0 %v704
    %782 = vmatprep.subr.mxu0 0.0
    %783 = vmatpush1.msra.mxu0 %v703
    %784 = vmatprep.subr.mxu0 0.0
    %785 = vmatpush1.msra.mxu0 %v702
    %786 = vmatprep.subr.mxu0 0.0
    %787 = vmatpush1.msra.mxu0 %v701
    %788 = vmatprep.subr.mxu0 0.0
    %789 = vmatpush2.msra.mxu0 %v732
    %790 = vmatprep.subr.mxu0 0.0
    %791 = vmatpush2.msra.mxu0 %v731
    %792 = vmatprep.subr.mxu0 0.0
    %793 = vmatpush2.msra.mxu0 %v730
    %794 = vmatprep.subr.mxu0 0.0
    %795 = vmatpush2.msra.mxu0 %v729
    %796 = vmatprep.subr.mxu0 0.0
    %797 = vmatpush2.msra.mxu0 %v728
    %798 = vmatprep.subr.mxu0 0.0
    %799 = vmatpush2.msra.mxu0 %v727
    %800 = vmatprep.subr.mxu0 0.0
    %801 = vmatpush2.msra.mxu0 %v726
    %802 = vmatprep.subr.mxu0 0.0
    %803 = vmatpush2.msra.mxu0 %v725
    %804 = vmatprep.subr.mxu0 0.0
    %805 = vmatpush2.msra.mxu0 %v724
    %806 = vmatprep.subr.mxu0 0.0
    %807 = vmatpush2.msra.mxu0 %v723
    %808 = vmatprep.subr.mxu0 0.0
    %809 = vmatpush2.msra.mxu0 %v722
    %810 = vmatprep.subr.mxu0 0.0
    %811 = vmatpush2.msra.mxu0 %v721
    %812 = vmatprep.subr.mxu0 0.0
    %813 = vmatpush2.msra.mxu0 %v720
    %814 = vmatprep.subr.mxu0 0.0
    %815 = vmatpush2.msra.mxu0 %v719
    %816 = vmatprep.subr.mxu0 0.0
    %817 = vmatpush2.msra.mxu0 %v718
    %818 = vmatprep.subr.mxu0 0.0
    %819 = vmatpush2.msra.mxu0 %v717
    %820 = vmatprep.mubr.f32.mxu0 %v527
    %821 = vmatmul.mubr.f32.gmra.mxu0 %v598
    %v822 = vpop.f32.mrf.mxu0
    %v823 = vadd.f32 %v754, %v822
    %v824 = vpop.f32.mrf.mxu0
    %825 = vmatprep.mubr.f32.mxu0 %v528
    %826 = vmatmul.mubr.f32.gmra.mxu0 %v603
    %v827 = vpop.f32.mrf.mxu0
    %v828 = vadd.f32 %v754, %v827
    %v829 = vpop.f32.mrf.mxu0
    %830 = vmatprep.mubr.f32.mxu0 %v529
    %831 = vmatmul.mubr.f32.gmra.mxu0 %v608
    %v832 = vpop.f32.mrf.mxu0
    %v833 = vadd.f32 %v754, %v832
    %v834 = vpop.f32.mrf.mxu0
    %835 = vmatprep.mubr.f32.mxu0 %v530
    %836 = vmatmul.mubr.f32.gmra.mxu0 %v613
    %v837 = vpop.f32.mrf.mxu0
    %v838 = vadd.f32 %v754, %v837
    %v839 = vpop.f32.mrf.mxu0
    %840 = vdwg.mxu0
    %841 = vmatprep.subr.mxu0 0.0
    %842 = vmatpush1.msra.mxu0 %v748
    %843 = vmatprep.subr.mxu0 0.0
    %844 = vmatpush1.msra.mxu0 %v747
    %845 = vmatprep.subr.mxu0 0.0
    %846 = vmatpush1.msra.mxu0 %v746
    %847 = vmatprep.subr.mxu0 0.0
    %848 = vmatpush1.msra.mxu0 %v745
    %849 = vmatprep.subr.mxu0 0.0
    %850 = vmatpush1.msra.mxu0 %v744
    %851 = vmatprep.subr.mxu0 0.0
    %852 = vmatpush1.msra.mxu0 %v743
    %853 = vmatprep.subr.mxu0 0.0
    %854 = vmatpush1.msra.mxu0 %v742
    %855 = vmatprep.subr.mxu0 0.0
    %856 = vmatpush1.msra.mxu0 %v741
    %857 = vmatprep.subr.mxu0 0.0
    %858 = vmatpush1.msra.mxu0 %v740
    %859 = vmatprep.subr.mxu0 0.0
    %860 = vmatpush1.msra.mxu0 %v739
    %861 = vmatprep.subr.mxu0 0.0
    %862 = vmatpush1.msra.mxu0 %v738
    %863 = vmatprep.subr.mxu0 0.0
    %864 = vmatpush1.msra.mxu0 %v737
    %865 = vmatprep.subr.mxu0 0.0
    %866 = vmatpush1.msra.mxu0 %v736
    %867 = vmatprep.subr.mxu0 0.0
    %868 = vmatpush1.msra.mxu0 %v735
    %869 = vmatprep.subr.mxu0 0.0
    %870 = vmatpush1.msra.mxu0 %v734
    %871 = vmatprep.subr.mxu0 0.0
    %872 = vmatpush1.msra.mxu0 %v733
    %873 = vmatprep.subr.mxu0 0.0
    %874 = vmatpush2.msra.mxu0 0.0
    %875 = vmatprep.subr.mxu0 0.0
    %876 = vmatpush2.msra.mxu0 0.0
    %877 = vmatprep.subr.mxu0 0.0
    %878 = vmatpush2.msra.mxu0 0.0
    %879 = vmatprep.subr.mxu0 0.0
    %880 = vmatpush2.msra.mxu0 0.0
    %881 = vmatprep.subr.mxu0 0.0
    %882 = vmatpush2.msra.mxu0 0.0
    %883 = vmatprep.subr.mxu0 0.0
    %884 = vmatpush2.msra.mxu0 0.0
    %885 = vmatprep.subr.mxu0 0.0
    %886 = vmatpush2.msra.mxu0 0.0
    %887 = vmatprep.subr.mxu0 0.0
    %888 = vmatpush2.msra.mxu0 0.0
    %889 = vmatprep.subr.mxu0 0.0
    %890 = vmatpush2.msra.mxu0 0.0
    %891 = vmatprep.subr.mxu0 0.0
    %892 = vmatpush2.msra.mxu0 0.0
    %893 = vmatprep.subr.mxu0 0.0
    %894 = vmatpush2.msra.mxu0 0.0
    %895 = vmatprep.subr.mxu0 0.0
    %896 = vmatpush2.msra.mxu0 0.0
    %897 = vmatprep.subr.mxu0 0.0
    %898 = vmatpush2.msra.mxu0 0.0
    %899 = vmatprep.subr.mxu0 0.0
    %900 = vmatpush2.msra.mxu0 0.0
    %901 = vmatprep.subr.mxu0 0.0
    %902 = vmatpush2.msra.mxu0 0.0
    %903 = vmatprep.subr.mxu0 0.0
    %904 = vmatpush2.msra.mxu0 0.0
    %905 = vmatprep.mubr.f32.mxu0 0.0
    %906 = vmatmul.mubr.f32.gmra.mxu0 %v683
    %v907 = vpop.f32.mrf.mxu0
    %v908 = vadd.f32 %v823, %v907
    %v909 = vpop.f32.mrf.mxu0
    %910 = vmatprep.mubr.f32.mxu0 0.0
    %911 = vmatmul.mubr.f32.gmra.mxu0 %v688
    %v912 = vpop.f32.mrf.mxu0
    %v913 = vadd.f32 %v828, %v912
    %v914 = vpop.f32.mrf.mxu0
    %915 = vmatprep.mubr.f32.mxu0 0.0
    %916 = vmatmul.mubr.f32.gmra.mxu0 %v693
    %v917 = vpop.f32.mrf.mxu0
    %v918 = vadd.f32 %v833, %v917
    %v919 = vpop.f32.mrf.mxu0
    %920 = vmatprep.mubr.f32.mxu0 0.0
    %921 = vmatmul.mubr.f32.gmra.mxu0 %v698
    %v922 = vpop.f32.mrf.mxu0
    %v923 = vadd.f32 %v838, %v922
    %v924 = vpop.f32.mrf.mxu0
    %925 = vdwg.mxu0
    %v926 = vadd.f32 %v908, %v95
    %v927 = vadd.f32 %v913, %v96
    %v928 = vadd.f32 %v918, %v97
    %v929 = vadd.f32 %v923, %v98
    %930 = vst [vmem:[#allocation11] sm:$0xff] %v926
    %931 = vst [vmem:[#allocation11 + $0x8] sm:$0xff] %v927
    %932 = vst [vmem:[#allocation11 + $0x10] sm:$0xff] %v928
    %933 = vst [vmem:[#allocation11 + $0x18] sm:$0xff] %v929
    // Predicated region
    $region50: #{tpu_custom_call.1} parent=1 // pred_check
      _
    $region51: #{tpu_custom_call.1} parent=1 // pred_check_branch
      %935 = sbr.rel (0) target = $region53
    $region52: #{tpu_custom_call.1} parent=1 // pred_region
      %s937 = ssub.s32 512, 512
      %938 = vsyncadd [#allocation4], %s937
      %s939 = sshll.u32 [#allocation11], 4
      %s940 = int_to_ptr.vmem [resolvable:$true] %s939
      %945 = dma.vmem_to_hbm [thread:$0]  %s940, 512, %s7, [#allocation4], 128, 128, 8
    $region53: #{tpu_custom_call.1} parent=1 // pred_fallthru
      _
    // Predicated region
    $region54: #{tpu_custom_call.1} parent=1 // pred_check
      _
    $region55: #{tpu_custom_call.1} parent=1 // pred_check_branch
      %947 = sbr.rel (0) target = $region57
    $region56: #{tpu_custom_call.1} parent=1 // pred_region
      %948 = dma.done [#allocation4], 512
    $region57: #{tpu_custom_call.1} parent=1 // pred_fallthru
      _
    %949 = vsyncpa [#allocation3], 1
    %950 = vsyncpa [#allocation6], 1
    %951 = vsyncpa [#allocation9], 1
    %952 = vsyncpa [#allocation4], 1

</llo_original>
